<compile_context>
chip_gen: v6e
topology: v6e:2x2x1
jax: 0.10.0
libtpu: 0.0.40
codegen_flags: <defaults>
</compile_context>

<pallas_src>
import jax
import jax.numpy as jnp
from jax.experimental import pallas as pl
from jax.experimental.pallas import tpu as pltpu


_VMEM_TILE_BUDGET = 24 * 1024 * 1024  # keep under the 32 MiB default scoped VMEM
_MAX_BATCH_BLOCK = 8


def _pick_batch_block(batch, bytes_per_batch_elem):
    """Largest batch block that (a) divides B, (b) keeps double-buffered
    input+output tiles under the VMEM budget, (c) leaves >=2 grid steps when
    possible (so v7x's two TensorCores both get work)."""
    feasible = [
        bb for bb in range(1, min(batch, _MAX_BATCH_BLOCK) + 1)
        if batch % bb == 0 and 4 * bb * bytes_per_batch_elem <= _VMEM_TILE_BUDGET
    ]
    if not feasible:
        return 1
    multi_step = [bb for bb in feasible if batch // bb >= 2]
    return max(multi_step) if multi_step else max(feasible)


def _time_mask_kernel(pos_ref, len_ref, x_ref, o_ref):
    """Zero x[b, :, pos[b]:pos[b]+len[b]] for every row b of this batch block."""
    pos = pos_ref[...]        # (Bb, 1, 1) int32
    length = len_ref[...]     # (Bb, 1, 1) int32
    # Single (1, 1, T) time iota; broadcast against per-row pos/len -> (Bb, 1, T).
    t_idx = jax.lax.broadcasted_iota(jnp.int32, (1, 1, x_ref.shape[-1]), 2)
    mask = (t_idx >= pos) & (t_idx < pos + length)
    # Scalar 0 fill; mask broadcasts over the frequency axis.
    o_ref[...] = jnp.where(mask, 0.0, x_ref[...])


def fbank_aug(x, key, time_mask_width=(0, 1000)):
    """JAX/Pallas equivalent of FbankAug.forward (time masking, dim=2).

    x: (B, F, T) float array.  Returns masked copy of x.  Fully jittable.
    """
    B, F, T = x.shape
    k_len, k_pos = jax.random.split(key)

    # torch.randint(low, high, (B,1)) semantics: [low, high)
    mask_len = jax.random.randint(
        k_len, (B,), time_mask_width[0], time_mask_width[1], dtype=jnp.int32
    )
    # torch.randint(0, max(1, D - mask_len.max())) -- computed on device, no host sync.
    upper = jnp.maximum(1, T - jnp.max(mask_len))
    mask_pos = jax.random.randint(k_pos, (B,), 0, upper, dtype=jnp.int32)

    bb = _pick_batch_block(B, F * T * jnp.dtype(x.dtype).itemsize)

    grid_spec = pltpu.PrefetchScalarGridSpec(
        num_scalar_prefetch=0,
        grid=(B // bb,),
        in_specs=[
            pl.BlockSpec((bb, 1, 1), lambda i: (i, 0, 0)),   # mask_pos
            pl.BlockSpec((bb, 1, 1), lambda i: (i, 0, 0)),   # mask_len
            pl.BlockSpec((bb, F, T), lambda i: (i, 0, 0)),   # x
        ],
        out_specs=pl.BlockSpec((bb, F, T), lambda i: (i, 0, 0)),
    )

    return pl.pallas_call(
        _time_mask_kernel,
        out_shape=jax.ShapeDtypeStruct((B, F, T), x.dtype),
        grid_spec=grid_spec,
        compiler_params=pltpu.CompilerParams(
            dimension_semantics=("parallel",),
        ),
    )(mask_pos.reshape(B, 1, 1), mask_len.reshape(B, 1, 1), x)


if __name__ == "__main__":
    key = jax.random.PRNGKey(0)
    k_x, k_mask = jax.random.split(key)

    B, F, T = 4, 8, 256  # (batch, fea, time) -- small, lane-dense (T % 128 == 0)
    x = jax.random.normal(k_x, (B, F, T), dtype=jnp.float32)

    # Module default is (0, 1000); with T < 1000 that masks the whole time axis
    # (matching torch).  Use a width that fits the demo T so masks are partial.
    width = (0, 100)
    fbank_aug_jit = jax.jit(lambda xx, kk: fbank_aug(xx, kk, time_mask_width=width))
    y = jax.block_until_ready(fbank_aug_jit(x, k_mask))

    # Pure-JAX reference with identical randomness / semantics.
    k_len, k_pos = jax.random.split(k_mask)
    mask_len = jax.random.randint(k_len, (B,), width[0], width[1], dtype=jnp.int32)
    upper = jnp.maximum(1, T - jnp.max(mask_len))
    mask_pos = jax.random.randint(k_pos, (B,), 0, upper, dtype=jnp.int32)
    ar = jnp.arange(T)[None, None, :]
    m = (mask_pos[:, None, None] <= ar) & (ar < (mask_pos + mask_len)[:, None, None])
    ref = jnp.where(m, 0.0, x)
    assert jnp.allclose(y, ref), "mismatch vs reference"

    print("KERNEL_OK")
</pallas_src>

<mosaic_0001>
module attributes {stable_mosaic.version = 11 : i64} {
  func.func @_time_mask_kernel(%arg0: i32, %arg1: memref<2x1x1xi32, #tpu.memory_space<vmem>>, %arg2: memref<2x1x1xi32, #tpu.memory_space<vmem>>, %arg3: memref<2x8x256xf32, #tpu.memory_space<vmem>>, %arg4: memref<2x8x256xf32, #tpu.memory_space<vmem>>) attributes {dimension_semantics = [#tpu.dimension_semantics<parallel>], iteration_bounds = array<i64: 2>, scalar_prefetch = 0 : i64, scratch_operands = 0 : i64, tpu.core_type = #tpu.core_type<tc>, window_params = [{transform_indices = @transform_0, window_bounds = array<i64: 2, 1, 1>}, {transform_indices = @transform_1, window_bounds = array<i64: 2, 1, 1>}, {transform_indices = @transform_2, window_bounds = array<i64: 2, 8, 256>}, {transform_indices = @transform_3, window_bounds = array<i64: 2, 8, 256>}]} {
    %c0 = arith.constant 0 : index
    %c0_0 = arith.constant 0 : index
    %c0_1 = arith.constant 0 : index
    %0 = vector.load %arg1[%c0, %c0_0, %c0_1] : memref<2x1x1xi32, #tpu.memory_space<vmem>>, vector<2x1x1xi32>
    %c0_2 = arith.constant 0 : index
    %c0_3 = arith.constant 0 : index
    %c0_4 = arith.constant 0 : index
    %1 = vector.load %arg2[%c0_2, %c0_3, %c0_4] : memref<2x1x1xi32, #tpu.memory_space<vmem>>, vector<2x1x1xi32>
    %2 = tpu.iota {dimensions = array<i32: 2>} : vector<1x1x256xi32>
    %3 = vector.broadcast %2 : vector<1x1x256xi32> to vector<2x1x256xi32>
    %4 = vector.broadcast %0 : vector<2x1x1xi32> to vector<2x1x256xi32>
    %5 = arith.cmpi sge, %3, %4 : vector<2x1x256xi32>
    %6 = arith.addi %0, %1 : vector<2x1x1xi32>
    %7 = vector.broadcast %2 : vector<1x1x256xi32> to vector<2x1x256xi32>
    %8 = vector.broadcast %6 : vector<2x1x1xi32> to vector<2x1x256xi32>
    %9 = arith.cmpi slt, %7, %8 : vector<2x1x256xi32>
    %10 = arith.andi %5, %9 : vector<2x1x256xi1>
    %c0_5 = arith.constant 0 : index
    %c0_6 = arith.constant 0 : index
    %c0_7 = arith.constant 0 : index
    %11 = vector.load %arg3[%c0_5, %c0_6, %c0_7] : memref<2x8x256xf32, #tpu.memory_space<vmem>>, vector<2x8x256xf32>
    %cst = arith.constant 0.000000e+00 : f32
    %12 = vector.shape_cast %10 : vector<2x1x256xi1> to vector<2x1x256xi1>
    %13 = vector.broadcast %12 : vector<2x1x256xi1> to vector<2x8x256xi1>
    %14 = vector.broadcast %cst : f32 to vector<2x8x256xf32>
    %15 = arith.select %13, %14, %11 : vector<2x8x256xi1>, vector<2x8x256xf32>
    %c0_8 = arith.constant 0 : index
    %c0_9 = arith.constant 0 : index
    %c0_10 = arith.constant 0 : index
    %16 = vector.load %arg4[%c0_8, %c0_9, %c0_10] : memref<2x8x256xf32, #tpu.memory_space<vmem>>, vector<2x8x256xf32>
    tpu.vector_store %arg4[%c0_8, %c0_9, %c0_10], %15 {strides = array<i32>} : memref<2x8x256xf32, #tpu.memory_space<vmem>>, vector<2x8x256xf32>,
    return
  }
  func.func @transform_0(%arg0: i32) -> (i32, i32, i32) {
    %c0_i32 = arith.constant 0 : i32
    %c0_i32_0 = arith.constant 0 : i32
    %c0_i32_1 = arith.constant 0 : i32
    return %arg0, %c0_i32, %c0_i32_0 : i32, i32, i32
  }
  func.func @transform_1(%arg0: i32) -> (i32, i32, i32) {
    %c0_i32 = arith.constant 0 : i32
    %c0_i32_0 = arith.constant 0 : i32
    %c0_i32_1 = arith.constant 0 : i32
    return %arg0, %c0_i32, %c0_i32_0 : i32, i32, i32
  }
  func.func @transform_2(%arg0: i32) -> (i32, i32, i32) {
    %c0_i32 = arith.constant 0 : i32
    %c0_i32_0 = arith.constant 0 : i32
    %c0_i32_1 = arith.constant 0 : i32
    return %arg0, %c0_i32, %c0_i32_0 : i32, i32, i32
  }
  func.func @transform_3(%arg0: i32) -> (i32, i32, i32) {
    %c0_i32 = arith.constant 0 : i32
    %c0_i32_0 = arith.constant 0 : i32
    %c0_i32_1 = arith.constant 0 : i32
    return %arg0, %c0_i32, %c0_i32_0 : i32, i32, i32
  }
}

</mosaic_0001>

<llo_original>
// kernel: _lambda_.1
$region0: #{_lambda_.1}
  #allocation0 [shape = 'u32[]', space=smem, size = 0x4, offset = 0x4, fixed_abs, tag = 'smem constant byte address 0x4 - core index']
  #allocation1 [shape = 'u32[144,128]{1,0:T(1,128)}', space=vmem, size = 0x12000, scoped, tag = 'internal scratch']
  %s0 = inlined_call_operand.vmem [shape: s32[4,1,1], index: 0, kind: input, shape index: {}]
  %s1 = inlined_call_operand.vmem [shape: s32[4,1,1], index: 1, kind: input, shape index: {}]
  %s2 = inlined_call_operand.vmem [shape: f32[4,8,256], index: 2, kind: input, shape index: {}]
  %s3 = inlined_call_operand.hbm [shape: f32[4,8,256], index: 3, kind: output, shape index: {}]
  %s4 = sld [smem:[#allocation0]]
  $region45: #{_lambda_.1} parent=0
    _
  %s6 = ssub.s32 1, %s4
  %s7 = scalar_select 0, %s6, %s4
  $region1: #{_lambda_.1} parent=0
    #allocation2 [shape = 'u8[32768]{0}', space=vmem, size = 0x8000, scoped, tag = 'output window, operand 0']
    #allocation3 [shape = 's32[2]{0}', space=sflag, size = 0x8, scoped, tag = 'scoped memory for _lambda_.1']
    %8 = vsyncpa [#allocation3], 0
    %s9 = scalar_lea.sflag [#allocation3], 1
    %10 = vsyncpa %s9, 0
    loop: start=0, step=1, limit=4
    $region2: #{_lambda_.1} parent=1 // loop_pre_header
      _
    $region3: #{_lambda_.1} parent=1 // loop_header
      %s12 = sphi 0, %s16
      %p13 = scmp.ge.s32.totalorder %s12, 4
      %s22 = sphi 0, %s24
      %s25 = sphi 0, %s22
      %s26 = sphi 0, %s25
      %s42 = sphi 0, %s26
      %s48 = sphi 0, %s50
      %s51 = sphi 0, %s48
      %s52 = sphi 0, %s51
      %s68 = sphi 0, %s52
      %s74 = sphi 0, %s76
      %s77 = sphi 0, %s74
      %s78 = sphi 0, %s77
      %s94 = sphi 0, %s78
      %s100 = sphi 0, %s102
      %s103 = sphi 0, %s100
      %s104 = sphi 0, %s103
      %s120 = sphi 0, %s104
    $region4: #{_lambda_.1} parent=1 // loop_header_branch
      %15 = sbr.rel (%p13) target = $region8
    $region5: #{_lambda_.1} parent=1 // loop_body
      %s17 = ssub.s32 %s12, 1
      %s18 = ssub.s32 %s12, 2
      %s19 = sadd.s32 %s12, 1
      %s20 = ssub.s32 %s12, %s19
      %p21 = scmp.eq.s32.totalorder %s20, 0
      %s23 = sadd.s32 %s22, 1
      %s24 = scalar_select %p21, %s22, %s23
      %p27 = pneg %p21
      %p28 = scmp.eq.s32.totalorder %s12, 1
      %p29 = por %p27, %p28
      %p30 = scmp.ne.s32.totalorder %s22, %s25
      %p31 = scmp.eq.s32.totalorder %s12, 0
      %p32 = por %p30, %p31
      %p33 = scmp.ne.s32.totalorder %s22, %s25
      %p34 = scmp.eq.s32.totalorder %s17, 1
      %p35 = por %p33, %p34
      %p36 = scmp.ne.s32.totalorder %s25, %s26
      %p37 = scmp.eq.s32.totalorder %s17, 0
      %p38 = por %p36, %p37
      %p39 = scmp.ne.s32.totalorder %s25, %s26
      %p40 = scmp.eq.s32.totalorder %s18, 1
      %p41 = por %p39, %p40
      %p43 = scmp.ne.s32.totalorder %s26, %s42
      %p44 = scmp.eq.s32.totalorder %s18, 0
      %p45 = por %p43, %p44
      %s46 = ssub.s32 %s12, %s19
      %p47 = scmp.eq.s32.totalorder %s46, 0
      %s49 = sadd.s32 %s48, 1
      %s50 = scalar_select %p47, %s48, %s49
      %p53 = pneg %p47
      %p54 = scmp.eq.s32.totalorder %s12, 1
      %p55 = por %p53, %p54
      %p56 = scmp.ne.s32.totalorder %s48, %s51
      %p57 = scmp.eq.s32.totalorder %s12, 0
      %p58 = por %p56, %p57
      %p59 = scmp.ne.s32.totalorder %s48, %s51
      %p60 = scmp.eq.s32.totalorder %s17, 1
      %p61 = por %p59, %p60
      %p62 = scmp.ne.s32.totalorder %s51, %s52
      %p63 = scmp.eq.s32.totalorder %s17, 0
      %p64 = por %p62, %p63
      %p65 = scmp.ne.s32.totalorder %s51, %s52
      %p66 = scmp.eq.s32.totalorder %s18, 1
      %p67 = por %p65, %p66
      %p69 = scmp.ne.s32.totalorder %s52, %s68
      %p70 = scmp.eq.s32.totalorder %s18, 0
      %p71 = por %p69, %p70
      %s72 = ssub.s32 %s12, %s19
      %p73 = scmp.eq.s32.totalorder %s72, 0
      %s75 = sadd.s32 %s74, 1
      %s76 = scalar_select %p73, %s74, %s75
      %p79 = pneg %p73
      %p80 = scmp.eq.s32.totalorder %s12, 1
      %p81 = por %p79, %p80
      %p82 = scmp.ne.s32.totalorder %s74, %s77
      %p83 = scmp.eq.s32.totalorder %s12, 0
      %p84 = por %p82, %p83
      %p85 = scmp.ne.s32.totalorder %s74, %s77
      %p86 = scmp.eq.s32.totalorder %s17, 1
      %p87 = por %p85, %p86
      %p88 = scmp.ne.s32.totalorder %s77, %s78
      %p89 = scmp.eq.s32.totalorder %s17, 0
      %p90 = por %p88, %p89
      %p91 = scmp.ne.s32.totalorder %s77, %s78
      %p92 = scmp.eq.s32.totalorder %s18, 1
      %p93 = por %p91, %p92
      %p95 = scmp.ne.s32.totalorder %s78, %s94
      %p96 = scmp.eq.s32.totalorder %s18, 0
      %p97 = por %p95, %p96
      %s98 = ssub.s32 %s12, %s19
      %p99 = scmp.eq.s32.totalorder %s98, 0
      %s101 = sadd.s32 %s100, 1
      %s102 = scalar_select %p99, %s100, %s101
      %p105 = pneg %p99
      %p106 = scmp.eq.s32.totalorder %s12, 1
      %p107 = por %p105, %p106
      %p108 = scmp.ne.s32.totalorder %s100, %s103
      %p109 = scmp.eq.s32.totalorder %s12, 0
      %p110 = por %p108, %p109
      %p111 = scmp.ne.s32.totalorder %s100, %s103
      %p112 = scmp.eq.s32.totalorder %s17, 1
      %p113 = por %p111, %p112
      %p114 = scmp.ne.s32.totalorder %s103, %s104
      %p115 = scmp.eq.s32.totalorder %s17, 0
      %p116 = por %p114, %p115
      %p117 = scmp.ne.s32.totalorder %s103, %s104
      %p118 = scmp.eq.s32.totalorder %s18, 1
      %p119 = por %p117, %p118
      %p121 = scmp.ne.s32.totalorder %s104, %s120
      %p122 = scmp.eq.s32.totalorder %s18, 0
      %p123 = por %p121, %p122
      %p124 = scmp.le.s32.totalorder 1, %s12
      %p125 = scmp.lt.s32.totalorder %s12, 3
      %p126 = pnand %p124, %p125
      %p127 = pneg %p126
      // Predicated region
      $region9: #{_lambda_.1} parent=5 // pred_check
        _
      $region10: #{_lambda_.1} parent=5 // pred_check_branch
        %129 = sbr.rel (%p126) target = $region12
      $region11: #{_lambda_.1} parent=5 // pred_region
        %s130 = ssub.s32 %s12, 1
      $region12: #{_lambda_.1} parent=5 // pred_fallthru
        _
      %p131 = scmp.lt.s32.totalorder %s12, 2
      // Predicated region
      $region13: #{_lambda_.1} parent=5 // pred_check
        %p132 = pneg %p131
      $region14: #{_lambda_.1} parent=5 // pred_check_branch
        %134 = sbr.rel (%p132) target = $region16
      $region15: #{_lambda_.1} parent=5 // pred_region
        // Predicated region
        $region17: #{_lambda_.1} parent=15 // pred_check
          %p135 = pneg %p32
        $region18: #{_lambda_.1} parent=15 // pred_check_branch
          %137 = sbr.rel (%p135) target = $region20
        $region19: #{_lambda_.1} parent=15 // pred_region
          %s138 = smul.u32 2, %s12
          %p139 = scmp.lt.s32.totalorder %s138, 3
          %s140 = scalar_select %p139, %s138, 3
          %s141 = scalar_lea.vmem %s0, %s140
          %s142 = smul.u32 2, %s12
        $region20: #{_lambda_.1} parent=15 // pred_fallthru
          _
        // Predicated region
        $region21: #{_lambda_.1} parent=15 // pred_check
          %p143 = pneg %p58
        $region22: #{_lambda_.1} parent=15 // pred_check_branch
          %145 = sbr.rel (%p143) target = $region24
        $region23: #{_lambda_.1} parent=15 // pred_region
          %s146 = smul.u32 2, %s12
          %p147 = scmp.lt.s32.totalorder %s146, 3
          %s148 = scalar_select %p147, %s146, 3
          %s149 = scalar_lea.vmem %s1, %s148
          %s150 = smul.u32 2, %s12
        $region24: #{_lambda_.1} parent=15 // pred_fallthru
          _
        // Predicated region
        $region25: #{_lambda_.1} parent=15 // pred_check
          %p151 = pneg %p84
        $region26: #{_lambda_.1} parent=15 // pred_check_branch
          %153 = sbr.rel (%p151) target = $region28
        $region27: #{_lambda_.1} parent=15 // pred_region
          %s154 = smul.u32 2, %s12
          %p155 = scmp.lt.s32.totalorder %s154, 3
          %s156 = scalar_select %p155, %s154, 3
          %s157 = smul.addr %s156, 2
          %s158 = smul.addr %s157, 8
          %s159 = scalar_lea.vmem %s2, %s158
          %s160 = smul.u32 2, %s12
        $region28: #{_lambda_.1} parent=15 // pred_fallthru
          _
      $region16: #{_lambda_.1} parent=5 // pred_fallthru
        _
      %p161 = scmp.le.s32.totalorder 1, %s12
      %p162 = scmp.lt.s32.totalorder %s12, 3
      %p163 = pnand %p161, %p162
      %p164 = pneg %p163
      // Predicated region
      $region29: #{_lambda_.1} parent=5 // pred_check
        _
      $region30: #{_lambda_.1} parent=5 // pred_check_branch
        %166 = sbr.rel (%p163) target = $region32
      $region31: #{_lambda_.1} parent=5 // pred_region
        %s167 = ssub.s32 %s12, 1
        %s168 = smul.u32 2, %s17
        %p169 = scmp.lt.s32.totalorder %s168, 3
        %s170 = scalar_select %p169, %s168, 3
        %s171 = scalar_lea.vmem %s0, %s170
        %p172 = pneg %p38
        %p173 = pneg %p35
        %s174 = smul.u32 2, %s17
        %p175 = scmp.lt.s32.totalorder %s174, 3
        %s176 = scalar_select %p175, %s174, 3
        %s177 = scalar_lea.vmem %s1, %s176
        %p178 = pneg %p64
        %p179 = pneg %p61
        %s180 = smul.u32 2, %s17
        %p181 = scmp.lt.s32.totalorder %s180, 3
        %s182 = scalar_select %p181, %s180, 3
        %s183 = smul.addr %s182, 2
        %s184 = smul.addr %s183, 8
        %s185 = scalar_lea.vmem %s2, %s184
        %p186 = pneg %p90
        %p187 = pneg %p87
        %p188 = pneg %p116
        %p189 = pneg %p113
        %s190 = sand.u32 %s103, 1
        %s191 = scalar_lea.sflag [#allocation3], %s190
        %s192 = sand.u32 %s103, 1
        %s193 = smul.addr %s192, 32
        %s194 = scalar_lea.vmem [#allocation2], %s193
        %s195 = smul.u32 2, %s17
        %p196 = scmp.lt.s32.totalorder %s195, 3
        %s197 = scalar_select %p196, %s195, 3
        %s198 = scalar_lea.vmem %s0, %s197
        %s199 = smul.u32 2, %s17
        %s200 = smul.u32 2, %s17
        %p201 = scmp.lt.s32.totalorder %s200, 3
        %s202 = scalar_select %p201, %s200, 3
        %s203 = scalar_lea.vmem %s1, %s202
        %s204 = smul.u32 2, %s17
        %s205 = smul.u32 2, %s17
        %p206 = scmp.lt.s32.totalorder %s205, 3
        %s207 = scalar_select %p206, %s205, 3
        %s208 = smul.addr %s207, 2
        %s209 = smul.addr %s208, 8
        %s210 = scalar_lea.vmem %s2, %s209
        %s211 = smul.u32 2, %s17
        %s212 = smul.u32 2, %s17
        %v213 = vld [vmem:[%s198] sm:$0x1]
        %v214 = vld [vmem:[%s198 + $0x1] sm:$0x1]
        %v215 = vld [vmem:[%s203] sm:$0x1]
        %v216 = vld [vmem:[%s203 + $0x1] sm:$0x1]
        %v217 = vlaneseq
        %v218 = vand.u32 %v217, 127
        %v219 = vadd.s32 %v218, 128
        %220 = vset.pattern.permute.xlu0 0
        %221 = vperm.xlu0 %220, %v213
        %v222 = vpop.permute.xlu0 %221
        %v223 = vlaneseq
        %v224 = vshrl.u32 %v223, 7
        %v225 = vsub.s32 0, %v224
        %v226 = vrot.slane %v222, %v225
        %227 = vset.pattern.permute.xlu0 0
        %228 = vperm.xlu0 %227, %v214
        %v229 = vpop.permute.xlu0 %228
        %v230 = vlaneseq
        %v231 = vshrl.u32 %v230, 7
        %v232 = vsub.s32 0, %v231
        %v233 = vrot.slane %v229, %v232
        %vm234 = vcmp.ge.s32.totalorder %v218, %v226
        %vm235 = vcmp.ge.s32.totalorder %v219, %v226
        %vm236 = vcmp.ge.s32.totalorder %v218, %v233
        %vm237 = vcmp.ge.s32.totalorder %v219, %v233
        %v238 = vadd.s32 %v213, %v215
        %v239 = vadd.s32 %v214, %v216
        %240 = vset.pattern.permute.xlu0 0
        %241 = vperm.xlu0 %240, %v238
        %v242 = vpop.permute.xlu0 %241
        %v243 = vlaneseq
        %v244 = vshrl.u32 %v243, 7
        %v245 = vsub.s32 0, %v244
        %v246 = vrot.slane %v242, %v245
        %247 = vset.pattern.permute.xlu0 0
        %248 = vperm.xlu0 %247, %v239
        %v249 = vpop.permute.xlu0 %248
        %v250 = vlaneseq
        %v251 = vshrl.u32 %v250, 7
        %v252 = vsub.s32 0, %v251
        %v253 = vrot.slane %v249, %v252
        %vm254 = vcmp.lt.s32.totalorder %v218, %v246
        %vm255 = vcmp.lt.s32.totalorder %v219, %v246
        %vm256 = vcmp.lt.s32.totalorder %v218, %v253
        %vm257 = vcmp.lt.s32.totalorder %v219, %v253
        %vm258 = vmand %vm234, %vm254
        %vm259 = vmand %vm235, %vm255
        %vm260 = vmand %vm236, %vm256
        %vm261 = vmand %vm237, %vm257
        %v262 = vld [vmem:[%s210] sm:$0xff]
        %v263 = vld [vmem:[%s210 + $0x8] sm:$0xff]
        %v264 = vld [vmem:[%s210 + $0x10] sm:$0xff]
        %v265 = vld [vmem:[%s210 + $0x18] sm:$0xff]
        %v266 = vsel %vm258, 1, 0
        %v267 = vsel %vm259, 1, 0
        %v268 = vsel %vm260, 1, 0
        %v269 = vsel %vm261, 1, 0
        %vm270 = vcmp.eq.s32.totalorder %v266, 1
        %vm271 = vcmp.eq.s32.totalorder %v267, 1
        %vm272 = vcmp.eq.s32.totalorder %v268, 1
        %vm273 = vcmp.eq.s32.totalorder %v269, 1
        %v274 = vsel %vm270, 0.0, %v262
        %v275 = vsel %vm271, 0.0, %v263
        %v276 = vsel %vm272, 0.0, %v264
        %v277 = vsel %vm273, 0.0, %v265
        %278 = vst [vmem:[%s194] sm:$0xff] %v274
        %279 = vst [vmem:[%s194 + $0x8] sm:$0xff] %v275
        %280 = vst [vmem:[%s194 + $0x10] sm:$0xff] %v276
        %281 = vst [vmem:[%s194 + $0x18] sm:$0xff] %v277
        %s282 = sand.u32 %s103, 1
        %s283 = scalar_lea.sflag [#allocation3], %s282
        %s284 = sand.u32 %s103, 1
        %s285 = smul.addr %s284, 32
        %s286 = scalar_lea.vmem [#allocation2], %s285
        // Predicated region
        $region33: #{_lambda_.1} parent=31 // pred_check
          %p287 = pneg %p113
        $region34: #{_lambda_.1} parent=31 // pred_check_branch
          %289 = sbr.rel (%p287) target = $region36
        $region35: #{_lambda_.1} parent=31 // pred_region
          %s290 = smul.u32 2, %s17
          %s292 = ssub.s32 512, 512
          %293 = vsyncadd %s283, %s292
          %s294 = smul.addr %s290, 2
          %s295 = smul.addr %s294, 128
          %s296 = scalar_lea.hbm %s3, %s295
          %s297 = sshll.u32 %s286, 4
          %s298 = int_to_ptr.vmem [resolvable:$true] %s297
          %303 = dma.vmem_to_hbm [thread:$0]  %s298, 512, %s296, %s283, 256, 256, 16
        $region36: #{_lambda_.1} parent=31 // pred_fallthru
          _
      $region32: #{_lambda_.1} parent=5 // pred_fallthru
        _
      %p304 = scmp.le.s32.totalorder 2, %s12
      // Predicated region
      $region37: #{_lambda_.1} parent=5 // pred_check
        %p305 = pneg %p304
      $region38: #{_lambda_.1} parent=5 // pred_check_branch
        %307 = sbr.rel (%p305) target = $region40
      $region39: #{_lambda_.1} parent=5 // pred_region
        %s308 = ssub.s32 %s12, 2
        // Predicated region
        $region41: #{_lambda_.1} parent=39 // pred_check
          %p309 = pneg %p119
        $region42: #{_lambda_.1} parent=39 // pred_check_branch
          %311 = sbr.rel (%p309) target = $region44
        $region43: #{_lambda_.1} parent=39 // pred_region
          %s312 = sand.u32 %s104, 1
          %s313 = scalar_lea.sflag [#allocation3], %s312
          %s314 = sand.u32 %s104, 1
          %s315 = smul.addr %s314, 32
          %s316 = scalar_lea.vmem [#allocation2], %s315
          %317 = dma.done %s313, 512
        $region44: #{_lambda_.1} parent=39 // pred_fallthru
          _
      $region40: #{_lambda_.1} parent=5 // pred_fallthru
        _
    $region6: #{_lambda_.1} parent=1 // loop_footer
      %s16 = sadd.s32 1, %s12
    $region7: #{_lambda_.1} parent=1 // loop_footer_branch
      %11 = sbr.rel target = $region3
    $region8: #{_lambda_.1} parent=1 // loop_exit
      _
    %318 = vsyncpa [#allocation3], 1
    %s319 = scalar_lea.sflag [#allocation3], 1
    %320 = vsyncpa %s319, 1

</llo_original>
